<compile_context>
chip_gen: v6e
topology: v6e:2x2x1
jax: 0.10.0
libtpu: 0.0.40
codegen_flags: <defaults>
</compile_context>

<pallas_src>
import functools

import jax
import jax.numpy as jnp
from jax.experimental import pallas as pl
from jax.experimental.pallas import tpu as pltpu

_LANE = 128
_SUBLANE = 16          # multiple of 16 works for both f32 (8) and bf16 (16) packing
_MAX_TILE_ROWS = 2048  # (2048, 128) f32 tile = 1 MiB per buffer


def _linear_kernel(wb_ref, x_ref, o_ref, *, compute_dtype):
    # wb_ref: SMEM (2,) f32 -> [weight, bias]; x_ref/o_ref: VMEM (tile_r, 128)
    w = wb_ref[0].astype(compute_dtype)
    b = wb_ref[1].astype(compute_dtype)
    o_ref[...] = (x_ref[...].astype(compute_dtype) * w + b).astype(o_ref.dtype)


def _device_kind():
    try:
        return jax.devices()[0].device_kind.lower()
    except Exception:
        return ""


def linear_regression_forward(x, weight, bias):
    """y = x @ weight.T + bias, weight (1,1), bias (1,). Returns same shape as x."""
    x = jnp.asarray(x)
    out_dtype = x.dtype
    n = x.size  # total scalars (in_features == 1)
    kind = _device_kind()

    # bf16 FMA only where the VALU supports it (v6e / v7x); f32 otherwise.
    bf16_ok = any(tag in kind for tag in ("v6", "v7", "tpu7"))
    compute_dtype = (
        jnp.bfloat16 if (x.dtype == jnp.bfloat16 and bf16_ok) else jnp.float32
    )

    # Pack the two scalar params into one 1-D SMEM array [w, b].
    wb = jnp.stack(
        [weight.reshape(()).astype(jnp.float32), bias.reshape(()).astype(jnp.float32)]
    )

    # Lane-dense slab: flatten -> pad only the <128-element tail -> (rows, 128).
    rows = pl.cdiv(n, _LANE)
    padded_n = rows * _LANE
    x_flat = x.reshape(-1)
    if padded_n != n:
        x_flat = jnp.pad(x_flat, (0, padded_n - n))
    x2d = x_flat.reshape(rows, _LANE)

    # Big tiles; ragged last grid block is masked by Pallas automatically.
    tile_r = min(_MAX_TILE_ROWS, ((rows + _SUBLANE - 1) // _SUBLANE) * _SUBLANE)
    grid = (pl.cdiv(rows, tile_r),)

    # Split the grid axis across both TensorCores on v7x; no-op elsewhere.
    if ("v7" in kind) or ("tpu7" in kind):
        semantics = (pltpu.CORE_PARALLEL,)
    else:
        semantics = ("parallel",)

    itemsize = jnp.dtype(out_dtype).itemsize
    out2d = pl.pallas_call(
        functools.partial(_linear_kernel, compute_dtype=compute_dtype),
        out_shape=jax.ShapeDtypeStruct((rows, _LANE), out_dtype),
        grid=grid,
        in_specs=[
            pl.BlockSpec(memory_space=pltpu.SMEM),            # packed [w, b]
            pl.BlockSpec((tile_r, _LANE), lambda i: (i, 0)),  # x tile
        ],
        out_specs=pl.BlockSpec((tile_r, _LANE), lambda i: (i, 0)),
        input_output_aliases={1: 0},  # donate the x slab to the output
        compiler_params=pltpu.CompilerParams(dimension_semantics=semantics),
        cost_estimate=pl.CostEstimate(
            flops=2 * padded_n,
            transcendentals=0,
            bytes_accessed=2 * padded_n * itemsize + wb.size * 4,
        ),
    )(wb, x2d)

    # Back to the caller's (batch, 1) shape; tail strip only if we padded.
    out_flat = out2d.reshape(-1)
    if padded_n != n:
        out_flat = out_flat[:n]
    return out_flat.reshape(x.shape)


if __name__ == "__main__":
    key = jax.random.PRNGKey(0)
    k_w, k_b, k_x = jax.random.split(key, 3)

    # nn.Linear(1, 1) shapes: weight (out=1, in=1), bias (1,)
    weight = jax.random.uniform(k_w, (1, 1), jnp.float32, minval=-1.0, maxval=1.0)
    bias = jax.random.uniform(k_b, (1,), jnp.float32, minval=-1.0, maxval=1.0)

    # Small batch of scalar inputs, shape (batch, 1)
    x = jax.random.normal(k_x, (8, 1), jnp.float32)

    y = linear_regression_forward(x, weight, bias)
    y = jax.block_until_ready(y)

    y_ref = x @ weight.T + bias
    assert y.shape == (8, 1)
    assert jnp.allclose(y, y_ref, atol=1e-6), "mismatch vs reference (small batch)"

    # Secondary sanity check: ragged batch spanning multiple grid steps.
    x_big = jax.random.normal(jax.random.PRNGKey(1), (300_000, 1), jnp.float32)
    y_big = jax.block_until_ready(linear_regression_forward(x_big, weight, bias))
    y_big_ref = x_big @ weight.T + bias
    assert y_big.shape == x_big.shape
    assert jnp.allclose(y_big, y_big_ref, rtol=1e-5, atol=1e-5), (
        "mismatch vs reference (large ragged batch)"
    )

    print("KERNEL_OK")
</pallas_src>

<mosaic_0001>
module attributes {stable_mosaic.version = 11 : i64} {
  func.func @_linear_kernel(%arg0: i32, %arg1: memref<2xf32, #tpu.memory_space<smem>>, %arg2: memref<16x128xf32, #tpu.memory_space<vmem>>, %arg3: memref<16x128xf32, #tpu.memory_space<vmem>>) attributes {dimension_semantics = [#tpu.dimension_semantics<parallel>], iteration_bounds = array<i64: 1>, scalar_prefetch = 0 : i64, scratch_operands = 0 : i64, tpu.core_type = #tpu.core_type<tc>, window_params = [{transform_indices = @transform_0, window_bounds = array<i64: 2>}, {transform_indices = @transform_1, window_bounds = array<i64: 16, 128>}, {transform_indices = @transform_2, window_bounds = array<i64: 16, 128>}]} {
    %c0 = arith.constant 0 : index
    %0 = memref.load %arg1[%c0] : memref<2xf32, #tpu.memory_space<smem>>
    %c1 = arith.constant 1 : index
    %1 = memref.load %arg1[%c1] : memref<2xf32, #tpu.memory_space<smem>>
    %c0_0 = arith.constant 0 : index
    %c0_1 = arith.constant 0 : index
    %2 = vector.load %arg2[%c0_0, %c0_1] : memref<16x128xf32, #tpu.memory_space<vmem>>, vector<16x128xf32>
    %3 = vector.broadcast %0 : f32 to vector<16x128xf32>
    %4 = arith.mulf %2, %3 : vector<16x128xf32>
    %5 = vector.broadcast %1 : f32 to vector<16x128xf32>
    %6 = arith.addf %4, %5 : vector<16x128xf32>
    %c0_2 = arith.constant 0 : index
    %c0_3 = arith.constant 0 : index
    %7 = vector.load %arg3[%c0_2, %c0_3] : memref<16x128xf32, #tpu.memory_space<vmem>>, vector<16x128xf32>
    tpu.vector_store %arg3[%c0_2, %c0_3], %6 {strides = array<i32>} : memref<16x128xf32, #tpu.memory_space<vmem>>, vector<16x128xf32>,
    return
  }
  func.func @transform_0(%arg0: i32) -> i32 {
    %c0_i32 = arith.constant 0 : i32
    %c0_i32_0 = arith.constant 0 : i32
    return %c0_i32 : i32
  }
  func.func @transform_1(%arg0: i32) -> (i32, i32) {
    %c0_i32 = arith.constant 0 : i32
    %c0_i32_0 = arith.constant 0 : i32
    return %arg0, %c0_i32 : i32, i32
  }
  func.func @transform_2(%arg0: i32) -> (i32, i32) {
    %c0_i32 = arith.constant 0 : i32
    %c0_i32_0 = arith.constant 0 : i32
    return %arg0, %c0_i32 : i32, i32
  }
}

</mosaic_0001>

<llo_original>
// kernel: tpu_custom_call.1
$region0: #{tpu_custom_call.1}
  #allocation0 [shape = 'u32[]', space=smem, size = 0x4, offset = 0x4, fixed_abs, tag = 'smem constant byte address 0x4 - core index']
  #allocation1 [shape = 'u32[144,128]{1,0:T(1,128)}', space=vmem, size = 0x12000, scoped, tag = 'internal scratch']
  %s0 = inlined_call_operand.vmem [shape: f32[2], index: 0, kind: input, shape index: {}]
  %s1 = inlined_call_operand.hbm [shape: f32[1,128], index: 1, kind: input, shape index: {}, may-alias: {1,2}]
  %s2 = inlined_call_operand.hbm [shape: f32[1,128], index: 2, kind: output, shape index: {}, may-alias: {1,2}]
  %s3 = sld [smem:[#allocation0]]
  $region26: #{tpu_custom_call.1} parent=0
    _
  %s5 = ssub.s32 1, %s3
  %s6 = scalar_select 0, %s5, %s3
  $region1: #{tpu_custom_call.1} parent=0
    #allocation2 [shape = 'u8[512]{0}', space=smem, size = 0x200, scoped, tag = 'input window, operand 0, single buffered']
    #allocation3 [shape = 's32[1]{0}', space=sflag, size = 0x4, scoped, tag = 'scoped memory for tpu_custom_call.1']
    #allocation4 [shape = 's32[1]{0}', space=sflag, size = 0x4, scoped, tag = 'scoped memory for tpu_custom_call.1']
    #allocation5 [shape = 's32[1]{0}', space=sflag, size = 0x4, scoped, tag = 'scoped memory for tpu_custom_call.1']
    #allocation6 [shape = 'u8[8192]{0}', space=vmem, size = 0x2000, scoped, tag = 'input window, operand 1, single buffered']
    #allocation7 [shape = 'u8[8192]{0}', space=vmem, size = 0x2000, scoped, tag = 'output window, operand 0, single buffered']
    %7 = vsyncpa [#allocation5], 0
    %8 = vsyncpa [#allocation3], 0
    %9 = vsyncpa [#allocation4], 0
    // Predicated region
    $region2: #{tpu_custom_call.1} parent=1 // pred_check
      _
    $region3: #{tpu_custom_call.1} parent=1 // pred_check_branch
      %11 = sbr.rel (0) target = $region5
    $region4: #{tpu_custom_call.1} parent=1 // pred_region
      %s13 = ssub.s32 16, 16
      %14 = vsyncadd [#allocation5], %s13
      %s16 = sshll.u32 %s0, 4
      %s17 = int_to_ptr.vmem [resolvable:$true] %s16
      %19 = dma.vmem_to_smem %s17, 16, [#allocation2], [#allocation5]
    $region5: #{tpu_custom_call.1} parent=1 // pred_fallthru
      _
    // Predicated region
    $region6: #{tpu_custom_call.1} parent=1 // pred_check
      _
    $region7: #{tpu_custom_call.1} parent=1 // pred_check_branch
      %21 = sbr.rel (0) target = $region9
    $region8: #{tpu_custom_call.1} parent=1 // pred_region
      %s23 = ssub.s32 256, 16
      %24 = vsyncadd [#allocation3], %s23
      %s25 = sshll.u32 [#allocation6], 4
      %s26 = int_to_ptr.vmem [resolvable:$true] %s25
      %31 = dma.hbm_to_vmem [thread:$0]  %s1, 16, %s26, [#allocation3], 16, 16, 1
    $region9: #{tpu_custom_call.1} parent=1 // pred_fallthru
      _
    // Predicated region
    $region10: #{tpu_custom_call.1} parent=1 // pred_check
      _
    $region11: #{tpu_custom_call.1} parent=1 // pred_check_branch
      %33 = sbr.rel (0) target = $region13
    $region12: #{tpu_custom_call.1} parent=1 // pred_region
      %34 = dma.done [#allocation5], 16
    $region13: #{tpu_custom_call.1} parent=1 // pred_fallthru
      _
    // Predicated region
    $region14: #{tpu_custom_call.1} parent=1 // pred_check
      _
    $region15: #{tpu_custom_call.1} parent=1 // pred_check_branch
      %36 = sbr.rel (0) target = $region17
    $region16: #{tpu_custom_call.1} parent=1 // pred_region
      %37 = dma.done [#allocation3], 256
    $region17: #{tpu_custom_call.1} parent=1 // pred_fallthru
      _
    %38 = sfence
    %s39 = sld [smem:[#allocation2]]
    %s40 = sld [smem:[#allocation2 + $0x1]]
    %v41 = vld [vmem:[#allocation6] sm:$0xff]
    %v42 = vld [vmem:[#allocation6 + $0x8] sm:$0xff]
    %v43 = vstv %s39
    %v44 = vmul.f32 %v41, %v43
    %v45 = vmul.f32 %v42, %v43
    %v46 = vstv %s40
    %v47 = vadd.f32 %v44, %v46
    %v48 = vadd.f32 %v45, %v46
    %49 = vst [vmem:[#allocation7] sm:$0xff] %v47
    %50 = vst [vmem:[#allocation7 + $0x8] sm:$0xff] %v48
    // Predicated region
    $region18: #{tpu_custom_call.1} parent=1 // pred_check
      _
    $region19: #{tpu_custom_call.1} parent=1 // pred_check_branch
      %52 = sbr.rel (0) target = $region21
    $region20: #{tpu_custom_call.1} parent=1 // pred_region
      %s54 = ssub.s32 256, 16
      %55 = vsyncadd [#allocation4], %s54
      %s56 = sshll.u32 [#allocation7], 4
      %s57 = int_to_ptr.vmem [resolvable:$true] %s56
      %62 = dma.vmem_to_hbm [thread:$0]  %s57, 16, %s2, [#allocation4], 16, 16, 1
    $region21: #{tpu_custom_call.1} parent=1 // pred_fallthru
      _
    // Predicated region
    $region22: #{tpu_custom_call.1} parent=1 // pred_check
      _
    $region23: #{tpu_custom_call.1} parent=1 // pred_check_branch
      %64 = sbr.rel (0) target = $region25
    $region24: #{tpu_custom_call.1} parent=1 // pred_region
      %65 = dma.done [#allocation4], 256
    $region25: #{tpu_custom_call.1} parent=1 // pred_fallthru
      _
    %66 = vsyncpa [#allocation3], 1
    %67 = vsyncpa [#allocation4], 1
    %68 = vsyncpa [#allocation5], 1

</llo_original>
